<compile_context>
chip_gen: v7x
topology: tpu7x:2x2x1
jax: 0.10.0
libtpu: 0.0.40
codegen_flags: <defaults>
</compile_context>

<pallas_src>
import math

import jax
import jax.numpy as jnp
from jax.experimental import pallas as pl
from jax.experimental.pallas import tpu as pltpu


def dwconv_kernel(xc_ref, xt_ref, xb_ref, w_ref, b_ref, o_ref, xpad_ref):
    # xc_ref : (1, TH, W, TC)   centre row strip of the input image
    # xt_ref : (1, 1,  W, TC)   row directly above the strip (clamped at top)
    # xb_ref : (1, 1,  W, TC)   row directly below the strip (clamped at bottom)
    # w_ref  : (3, 3, TC)       depthwise weights (ky, kx, c)
    # b_ref  : (1, TC)          bias
    # o_ref  : (1, TH, W, TC)   output strip
    # xpad_ref: (TH+2, W+2, TC) f32 zero-padded input scratch
    th, w_dim, tc = o_ref.shape[1], o_ref.shape[2], o_ref.shape[3]
    f32 = jnp.float32

    strip = pl.program_id(2)
    n_strips = pl.num_programs(2)

    # ---- fill the padded scratch (single f32 cast of the strip) --------------
    # Left / right zero-pad columns.  They are never touched by the interior
    # fill, but scratch state is per-core and grid steps may be sharded across
    # cores, so re-zero them every step (2 columns: negligible store traffic).
    zcol = jnp.zeros((th + 2, 1, tc), f32)
    xpad_ref[:, 0:1, :] = zcol
    xpad_ref[:, w_dim + 1:w_dim + 2, :] = zcol

    # Centre strip (cast to f32 exactly once).
    xpad_ref[1:th + 1, 1:w_dim + 1, :] = xc_ref[0].astype(f32)

    # Halo rows; multiplicatively zeroed when the strip touches the image
    # border (the clamped row fetched by the BlockSpec is then discarded).
    top_keep = (strip > 0).astype(f32)
    bot_keep = (strip < n_strips - 1).astype(f32)
    xpad_ref[0, 1:w_dim + 1, :] = xt_ref[0, 0].astype(f32) * top_keep
    xpad_ref[th + 1, 1:w_dim + 1, :] = xb_ref[0, 0].astype(f32) * bot_keep

    # ---- fused 9-tap multiply-accumulate in registers, single output store ---
    w = w_ref[...].astype(f32)      # (3, 3, TC); cast hoisted out of the loop
    bias = b_ref[0].astype(f32)     # (TC,)

    acc = None
    for dy in range(3):
        for dx in range(3):
            tap = xpad_ref[dy:dy + th, dx:dx + w_dim, :]   # (TH, W, TC)
            term = tap * w[dy, dx, :]
            acc = term if acc is None else acc + term
    acc = acc + bias

    o_ref[0] = acc.astype(o_ref.dtype)


def _largest_divisor_at_most(n, cap):
    cap = max(1, min(n, cap))
    for d in range(cap, 0, -1):
        if n % d == 0:
            return d
    return 1


def _vmem_capacity_bytes():
    try:
        return int(pltpu.get_tpu_info().vmem_capacity_bytes)
    except Exception:
        return 128 * 1024 * 1024   # v5e/v6e default; clamp below keeps v7x safe


def dwconv_forward(x, weight, bias, H, W, *, row_tile=None, c_tile=None,
                   target_block_bytes=4 << 20, min_grid_steps=4):
    """DWConv.forward: depthwise 3x3 conv, stride 1, pad 1, groups=C.

    x: (B, N, C) with N = H*W.  weight: (3, 3, C) == torch (C,1,3,3) weight
    permuted to (kH, kW, C).  bias: (C,).  Returns (B, N, C) in x.dtype
    (accumulation is in f32, so bf16 I/O is also supported).
    """
    B, N, C = x.shape
    assert N == H * W
    assert weight.shape == (3, 3, C) and bias.shape == (C,)
    itemsize = jnp.dtype(x.dtype).itemsize

    # Channel tile: 128 keeps the lane dimension dense; fall back to full C.
    # TODO(synk): for C not a multiple of 128 (early PVT stages), fold a factor
    # of W into the lane dim (pltpu.roll by C + group-boundary fixup for the dx
    # taps) so stores stay lane-dense instead of masked vst.msk.
    if c_tile is None:
        c_tile = 128 if C % 128 == 0 else C
    assert C % c_tile == 0
    n_c = C // c_tile

    # Row-strip tile: largest divisor of H whose input block is around
    # target_block_bytes (big strips amortise the 2 halo rows and per-step
    # overhead), then shrunk if needed so the grid has enough parallel steps
    # for both v7x TensorCores / DMA pipelining.
    if row_tile is None:
        rows_cap = max(1, target_block_bytes // max(1, W * c_tile * itemsize))
        row_tile = _largest_divisor_at_most(H, rows_cap)
        while B * n_c * (H // row_tile) < min_grid_steps and row_tile > 1:
            row_tile = _largest_divisor_at_most(H, row_tile - 1)
    assert H % row_tile == 0
    th = row_tile
    n_h = H // th

    x_img = x.reshape(B, H, W, C)     # metadata-only reshape; no HBM pad pass
    bias2d = bias.reshape(1, C)

    # Per-step VMEM need (double-buffered blocks + padded f32 scratch) and a
    # generation-aware limit (leave ~1/4 of physical per-core VMEM headroom).
    blk = th * W * c_tile * itemsize
    halo = 2 * W * c_tile * itemsize
    wb = 10 * c_tile * jnp.dtype(weight.dtype).itemsize
    scratch = (th + 2) * (W + 2) * c_tile * 4
    need = 2 * (2 * blk + halo + wb) + scratch
    vmem_cap = (_vmem_capacity_bytes() * 3) // 4
    vmem_limit = int(min(max(2 * need, 32 * 1024 * 1024), vmem_cap))

    out = pl.pallas_call(
        dwconv_kernel,
        out_shape=jax.ShapeDtypeStruct((B, H, W, C), x.dtype),
        grid=(B, n_c, n_h),
        in_specs=[
            # centre row strip
            pl.BlockSpec((1, th, W, c_tile), lambda b, c, h: (b, h, 0, c)),
            # single halo row above the strip (clamped; zeroed in-kernel at h==0)
            pl.BlockSpec((1, 1, W, c_tile),
                         lambda b, c, h: (b, jnp.maximum(h * th - 1, 0), 0, c)),
            # single halo row below the strip (clamped; zeroed at h==n_h-1)
            pl.BlockSpec((1, 1, W, c_tile),
                         lambda b, c, h: (b, jnp.minimum((h + 1) * th, H - 1), 0, c)),
            # weights / bias stay resident across the (innermost) row-strip axis
            pl.BlockSpec((3, 3, c_tile), lambda b, c, h: (0, 0, c)),
            pl.BlockSpec((1, c_tile), lambda b, c, h: (0, c)),
        ],
        out_specs=pl.BlockSpec((1, th, W, c_tile), lambda b, c, h: (b, h, 0, c)),
        scratch_shapes=[pltpu.VMEM((th + 2, W + 2, c_tile), jnp.float32)],
        compiler_params=pltpu.CompilerParams(
            dimension_semantics=("parallel", "parallel", "parallel"),
            vmem_limit_bytes=vmem_limit),
    )(x_img, x_img, x_img, weight, bias2d)

    return out.reshape(B, N, C)


def reference_dwconv(x, weight, bias, H, W):
    """Pure-JAX reference using lax.conv_general_dilated (depthwise)."""
    B, N, C = x.shape
    x_img = x.reshape(B, H, W, C)
    w = weight.reshape(3, 3, 1, C)   # HWIO with feature_group_count=C
    y = jax.lax.conv_general_dilated(
        x_img, w, window_strides=(1, 1), padding=((1, 1), (1, 1)),
        dimension_numbers=("NHWC", "HWIO", "NHWC"), feature_group_count=C)
    y = y + bias.reshape(1, 1, 1, C)
    return y.reshape(B, N, C)


if __name__ == "__main__":
    key = jax.random.PRNGKey(0)

    def run_case(B, H, W, C, row_tile=None):
        kx, kw, kb = jax.random.split(
            jax.random.fold_in(key, B * 100000 + H * 1000 + C), 3)
        N = H * W
        x = jax.random.normal(kx, (B, N, C), dtype=jnp.float32)
        # Module init: weight ~ N(0, sqrt(2/fan_out)), fan_out = 9.  Bias is
        # zero-initialized in the module; use a small nonzero bias here to
        # exercise the bias path (forward semantics are identical).
        std = math.sqrt(2.0 / 9.0)
        weight = std * jax.random.normal(kw, (3, 3, C), dtype=jnp.float32)
        bias = 0.1 * jax.random.normal(kb, (C,), dtype=jnp.float32)

        out = dwconv_forward(x, weight, bias, H, W, row_tile=row_tile)
        out = jax.block_until_ready(out)
        ref = reference_dwconv(x, weight, bias, H, W)
        assert out.shape == (B, N, C)
        err = jnp.max(jnp.abs(out - ref))
        assert jnp.allclose(out, ref, atol=1e-5, rtol=1e-5), (
            f"mismatch: max abs err {err}")

    # Lane-dense channel tiles (C % 128 == 0), two row strips -> exercises the
    # halo rows and the boundary zeroing.
    run_case(B=2, H=16, W=16, C=256, row_tile=8)
    # Auto tiling: single strip per image (both halo rows fully zeroed).
    run_case(B=2, H=16, W=16, C=256)
    # Small-C fallback (C not a multiple of 128) + grid-step floor: the
    # heuristic shrinks the strip so B * n_c * n_h >= 4.
    run_case(B=1, H=8, W=8, C=64)

    print("KERNEL_OK")
</pallas_src>

<mosaic_0001>
module attributes {stable_mosaic.version = 11 : i64} {
  func.func @dwconv_kernel(%arg0: i32, %arg1: i32, %arg2: i32, %arg3: memref<1x8x16x128xf32, #tpu.memory_space<vmem>>, %arg4: memref<1x1x16x128xf32, #tpu.memory_space<vmem>>, %arg5: memref<1x1x16x128xf32, #tpu.memory_space<vmem>>, %arg6: memref<3x3x128xf32, #tpu.memory_space<vmem>>, %arg7: memref<1x128xf32, #tpu.memory_space<vmem>>, %arg8: memref<1x8x16x128xf32, #tpu.memory_space<vmem>>, %arg9: memref<10x18x128xf32, #tpu.memory_space<vmem>>) attributes {dimension_semantics = [#tpu.dimension_semantics<parallel>, #tpu.dimension_semantics<parallel>, #tpu.dimension_semantics<parallel>], iteration_bounds = array<i64: 2, 2, 2>, scalar_prefetch = 0 : i64, scratch_operands = 1 : i64, tpu.core_type = #tpu.core_type<tc>, window_params = [{transform_indices = @transform_0, window_bounds = array<i64: 1, 8, 16, 128>}, {transform_indices = @transform_1, window_bounds = array<i64: 1, 1, 16, 128>}, {transform_indices = @transform_2, window_bounds = array<i64: 1, 1, 16, 128>}, {transform_indices = @transform_3, window_bounds = array<i64: 3, 3, 128>}, {transform_indices = @transform_4, window_bounds = array<i64: 1, 128>}, {transform_indices = @transform_5, window_bounds = array<i64: 1, 8, 16, 128>}]} {
    %cst = arith.constant 0.000000e+00 : f32
    %0 = vector.broadcast %cst : f32 to vector<10x1x128xf32>
    %c0 = arith.constant 0 : index
    %c0_0 = arith.constant 0 : index
    %c0_1 = arith.constant 0 : index
    %1 = vector.load %arg9[%c0, %c0_0, %c0_1] : memref<10x18x128xf32, #tpu.memory_space<vmem>>, vector<10x1x128xf32>
    tpu.vector_store %arg9[%c0, %c0_0, %c0_1], %0 {strides = array<i32>} : memref<10x18x128xf32, #tpu.memory_space<vmem>>, vector<10x1x128xf32>,
    %c0_2 = arith.constant 0 : index
    %c17 = arith.constant 17 : index
    %c0_3 = arith.constant 0 : index
    %2 = vector.load %arg9[%c0_2, %c17, %c0_3] : memref<10x18x128xf32, #tpu.memory_space<vmem>>, vector<10x1x128xf32>
    tpu.vector_store %arg9[%c0_2, %c17, %c0_3], %0 {strides = array<i32>} : memref<10x18x128xf32, #tpu.memory_space<vmem>>, vector<10x1x128xf32>,
    %c0_4 = arith.constant 0 : index
    %c0_5 = arith.constant 0 : index
    %c0_6 = arith.constant 0 : index
    %c0_7 = arith.constant 0 : index
    %3 = vector.load %arg3[%c0_4, %c0_5, %c0_6, %c0_7] : memref<1x8x16x128xf32, #tpu.memory_space<vmem>>, vector<1x8x16x128xf32>
    %4 = vector.shape_cast %3 : vector<1x8x16x128xf32> to vector<8x16x128xf32>
    %c1 = arith.constant 1 : index
    %c1_8 = arith.constant 1 : index
    %c0_9 = arith.constant 0 : index
    %5 = vector.load %arg9[%c1, %c1_8, %c0_9] : memref<10x18x128xf32, #tpu.memory_space<vmem>>, vector<8x16x128xf32>
    tpu.vector_store %arg9[%c1, %c1_8, %c0_9], %4 {strides = array<i32>} : memref<10x18x128xf32, #tpu.memory_space<vmem>>, vector<8x16x128xf32>,
    %c0_i32 = arith.constant 0 : i32
    %6 = arith.cmpi sgt, %arg2, %c0_i32 : i32
    %7 = arith.extui %6 : i1 to i32
    %8 = arith.sitofp %7 : i32 to f32
    %c1_i32 = arith.constant 1 : i32
    %9 = arith.cmpi slt, %arg2, %c1_i32 : i32
    %10 = arith.extui %9 : i1 to i32
    %11 = arith.sitofp %10 : i32 to f32
    %c0_10 = arith.constant 0 : index
    %c0_11 = arith.constant 0 : index
    %c0_12 = arith.constant 0 : index
    %c0_13 = arith.constant 0 : index
    %12 = vector.load %arg4[%c0_10, %c0_11, %c0_12, %c0_13] : memref<1x1x16x128xf32, #tpu.memory_space<vmem>>, vector<1x1x16x128xf32>
    %13 = vector.shape_cast %12 : vector<1x1x16x128xf32> to vector<16x128xf32>
    %14 = vector.broadcast %8 : f32 to vector<16x128xf32>
    %15 = arith.mulf %13, %14 : vector<16x128xf32>
    %c0_14 = arith.constant 0 : index
    %c1_15 = arith.constant 1 : index
    %c0_16 = arith.constant 0 : index
    %16 = vector.load %arg9[%c0_14, %c1_15, %c0_16] : memref<10x18x128xf32, #tpu.memory_space<vmem>>, vector<1x16x128xf32>
    %17 = vector.shape_cast %16 : vector<1x16x128xf32> to vector<16x128xf32>
    %18 = vector.shape_cast %15 : vector<16x128xf32> to vector<1x16x128xf32>
    tpu.vector_store %arg9[%c0_14, %c1_15, %c0_16], %18 {strides = array<i32>} : memref<10x18x128xf32, #tpu.memory_space<vmem>>, vector<1x16x128xf32>,
    %c0_17 = arith.constant 0 : index
    %c0_18 = arith.constant 0 : index
    %c0_19 = arith.constant 0 : index
    %c0_20 = arith.constant 0 : index
    %19 = vector.load %arg5[%c0_17, %c0_18, %c0_19, %c0_20] : memref<1x1x16x128xf32, #tpu.memory_space<vmem>>, vector<1x1x16x128xf32>
    %20 = vector.shape_cast %19 : vector<1x1x16x128xf32> to vector<16x128xf32>
    %21 = vector.broadcast %11 : f32 to vector<16x128xf32>
    %22 = arith.mulf %20, %21 : vector<16x128xf32>
    %c9 = arith.constant 9 : index
    %c1_21 = arith.constant 1 : index
    %c0_22 = arith.constant 0 : index
    %23 = vector.load %arg9[%c9, %c1_21, %c0_22] : memref<10x18x128xf32, #tpu.memory_space<vmem>>, vector<1x16x128xf32>
    %24 = vector.shape_cast %23 : vector<1x16x128xf32> to vector<16x128xf32>
    %25 = vector.shape_cast %22 : vector<16x128xf32> to vector<1x16x128xf32>
    tpu.vector_store %arg9[%c9, %c1_21, %c0_22], %25 {strides = array<i32>} : memref<10x18x128xf32, #tpu.memory_space<vmem>>, vector<1x16x128xf32>,
    %c0_23 = arith.constant 0 : index
    %c0_24 = arith.constant 0 : index
    %c0_25 = arith.constant 0 : index
    %26 = vector.load %arg6[%c0_23, %c0_24, %c0_25] : memref<3x3x128xf32, #tpu.memory_space<vmem>>, vector<3x3x128xf32>
    %c0_26 = arith.constant 0 : index
    %c0_27 = arith.constant 0 : index
    %27 = vector.load %arg7[%c0_26, %c0_27] : memref<1x128xf32, #tpu.memory_space<vmem>>, vector<1x128xf32>
    %28 = vector.shape_cast %27 : vector<1x128xf32> to vector<128xf32>
    %c0_28 = arith.constant 0 : index
    %c0_29 = arith.constant 0 : index
    %c0_30 = arith.constant 0 : index
    %29 = vector.load %arg9[%c0_28, %c0_29, %c0_30] : memref<10x18x128xf32, #tpu.memory_space<vmem>>, vector<8x16x128xf32>
    %30 = vector.extract_strided_slice %26 {offsets = [0, 0, 0], sizes = [1, 1, 128], strides = [1, 1, 1]} : vector<3x3x128xf32> to vector<1x1x128xf32>
    %31 = vector.shape_cast %30 : vector<1x1x128xf32> to vector<128xf32>
    %32 = vector.shape_cast %31 : vector<128xf32> to vector<1x1x128xf32>
    %33 = vector.broadcast %32 : vector<1x1x128xf32> to vector<8x16x128xf32>
    %34 = arith.mulf %29, %33 : vector<8x16x128xf32>
    %c0_31 = arith.constant 0 : index
    %c1_32 = arith.constant 1 : index
    %c0_33 = arith.constant 0 : index
    %35 = vector.load %arg9[%c0_31, %c1_32, %c0_33] : memref<10x18x128xf32, #tpu.memory_space<vmem>>, vector<8x16x128xf32>
    %36 = vector.extract_strided_slice %26 {offsets = [0, 1, 0], sizes = [1, 1, 128], strides = [1, 1, 1]} : vector<3x3x128xf32> to vector<1x1x128xf32>
    %37 = vector.shape_cast %36 : vector<1x1x128xf32> to vector<128xf32>
    %38 = vector.shape_cast %37 : vector<128xf32> to vector<1x1x128xf32>
    %39 = vector.broadcast %38 : vector<1x1x128xf32> to vector<8x16x128xf32>
    %40 = arith.mulf %35, %39 : vector<8x16x128xf32>
    %41 = arith.addf %34, %40 : vector<8x16x128xf32>
    %c0_34 = arith.constant 0 : index
    %c2 = arith.constant 2 : index
    %c0_35 = arith.constant 0 : index
    %42 = vector.load %arg9[%c0_34, %c2, %c0_35] : memref<10x18x128xf32, #tpu.memory_space<vmem>>, vector<8x16x128xf32>
    %43 = vector.extract_strided_slice %26 {offsets = [0, 2, 0], sizes = [1, 1, 128], strides = [1, 1, 1]} : vector<3x3x128xf32> to vector<1x1x128xf32>
    %44 = vector.shape_cast %43 : vector<1x1x128xf32> to vector<128xf32>
    %45 = vector.shape_cast %44 : vector<128xf32> to vector<1x1x128xf32>
    %46 = vector.broadcast %45 : vector<1x1x128xf32> to vector<8x16x128xf32>
    %47 = arith.mulf %42, %46 : vector<8x16x128xf32>
    %48 = arith.addf %41, %47 : vector<8x16x128xf32>
    %c1_36 = arith.constant 1 : index
    %c0_37 = arith.constant 0 : index
    %c0_38 = arith.constant 0 : index
    %49 = vector.load %arg9[%c1_36, %c0_37, %c0_38] : memref<10x18x128xf32, #tpu.memory_space<vmem>>, vector<8x16x128xf32>
    %50 = vector.extract_strided_slice %26 {offsets = [1, 0, 0], sizes = [1, 1, 128], strides = [1, 1, 1]} : vector<3x3x128xf32> to vector<1x1x128xf32>
    %51 = vector.shape_cast %50 : vector<1x1x128xf32> to vector<128xf32>
    %52 = vector.shape_cast %51 : vector<128xf32> to vector<1x1x128xf32>
    %53 = vector.broadcast %52 : vector<1x1x128xf32> to vector<8x16x128xf32>
    %54 = arith.mulf %49, %53 : vector<8x16x128xf32>
    %55 = arith.addf %48, %54 : vector<8x16x128xf32>
    %c1_39 = arith.constant 1 : index
    %c1_40 = arith.constant 1 : index
    %c0_41 = arith.constant 0 : index
    %56 = vector.load %arg9[%c1_39, %c1_40, %c0_41] : memref<10x18x128xf32, #tpu.memory_space<vmem>>, vector<8x16x128xf32>
    %57 = vector.extract_strided_slice %26 {offsets = [1, 1, 0], sizes = [1, 1, 128], strides = [1, 1, 1]} : vector<3x3x128xf32> to vector<1x1x128xf32>
    %58 = vector.shape_cast %57 : vector<1x1x128xf32> to vector<128xf32>
    %59 = vector.shape_cast %58 : vector<128xf32> to vector<1x1x128xf32>
    %60 = vector.broadcast %59 : vector<1x1x128xf32> to vector<8x16x128xf32>
    %61 = arith.mulf %56, %60 : vector<8x16x128xf32>
    %62 = arith.addf %55, %61 : vector<8x16x128xf32>
    %c1_42 = arith.constant 1 : index
    %c2_43 = arith.constant 2 : index
    %c0_44 = arith.constant 0 : index
    %63 = vector.load %arg9[%c1_42, %c2_43, %c0_44] : memref<10x18x128xf32, #tpu.memory_space<vmem>>, vector<8x16x128xf32>
    %64 = vector.extract_strided_slice %26 {offsets = [1, 2, 0], sizes = [1, 1, 128], strides = [1, 1, 1]} : vector<3x3x128xf32> to vector<1x1x128xf32>
    %65 = vector.shape_cast %64 : vector<1x1x128xf32> to vector<128xf32>
    %66 = vector.shape_cast %65 : vector<128xf32> to vector<1x1x128xf32>
    %67 = vector.broadcast %66 : vector<1x1x128xf32> to vector<8x16x128xf32>
    %68 = arith.mulf %63, %67 : vector<8x16x128xf32>
    %69 = arith.addf %62, %68 : vector<8x16x128xf32>
    %c2_45 = arith.constant 2 : index
    %c0_46 = arith.constant 0 : index
    %c0_47 = arith.constant 0 : index
    %70 = vector.load %arg9[%c2_45, %c0_46, %c0_47] : memref<10x18x128xf32, #tpu.memory_space<vmem>>, vector<8x16x128xf32>
    %71 = vector.extract_strided_slice %26 {offsets = [2, 0, 0], sizes = [1, 1, 128], strides = [1, 1, 1]} : vector<3x3x128xf32> to vector<1x1x128xf32>
    %72 = vector.shape_cast %71 : vector<1x1x128xf32> to vector<128xf32>
    %73 = vector.shape_cast %72 : vector<128xf32> to vector<1x1x128xf32>
    %74 = vector.broadcast %73 : vector<1x1x128xf32> to vector<8x16x128xf32>
    %75 = arith.mulf %70, %74 : vector<8x16x128xf32>
    %76 = arith.addf %69, %75 : vector<8x16x128xf32>
    %c2_48 = arith.constant 2 : index
    %c1_49 = arith.constant 1 : index
    %c0_50 = arith.constant 0 : index
    %77 = vector.load %arg9[%c2_48, %c1_49, %c0_50] : memref<10x18x128xf32, #tpu.memory_space<vmem>>, vector<8x16x128xf32>
    %78 = vector.extract_strided_slice %26 {offsets = [2, 1, 0], sizes = [1, 1, 128], strides = [1, 1, 1]} : vector<3x3x128xf32> to vector<1x1x128xf32>
    %79 = vector.shape_cast %78 : vector<1x1x128xf32> to vector<128xf32>
    %80 = vector.shape_cast %79 : vector<128xf32> to vector<1x1x128xf32>
    %81 = vector.broadcast %80 : vector<1x1x128xf32> to vector<8x16x128xf32>
    %82 = arith.mulf %77, %81 : vector<8x16x128xf32>
    %83 = arith.addf %76, %82 : vector<8x16x128xf32>
    %c2_51 = arith.constant 2 : index
    %c2_52 = arith.constant 2 : index
    %c0_53 = arith.constant 0 : index
    %84 = vector.load %arg9[%c2_51, %c2_52, %c0_53] : memref<10x18x128xf32, #tpu.memory_space<vmem>>, vector<8x16x128xf32>
    %85 = vector.extract_strided_slice %26 {offsets = [2, 2, 0], sizes = [1, 1, 128], strides = [1, 1, 1]} : vector<3x3x128xf32> to vector<1x1x128xf32>
    %86 = vector.shape_cast %85 : vector<1x1x128xf32> to vector<128xf32>
    %87 = vector.shape_cast %86 : vector<128xf32> to vector<1x1x128xf32>
    %88 = vector.broadcast %87 : vector<1x1x128xf32> to vector<8x16x128xf32>
    %89 = arith.mulf %84, %88 : vector<8x16x128xf32>
    %90 = arith.addf %83, %89 : vector<8x16x128xf32>
    %91 = vector.shape_cast %28 : vector<128xf32> to vector<1x1x128xf32>
    %92 = vector.broadcast %91 : vector<1x1x128xf32> to vector<8x16x128xf32>
    %93 = arith.addf %90, %92 : vector<8x16x128xf32>
    %c0_54 = arith.constant 0 : index
    %c0_55 = arith.constant 0 : index
    %c0_56 = arith.constant 0 : index
    %c0_57 = arith.constant 0 : index
    %94 = vector.load %arg8[%c0_54, %c0_55, %c0_56, %c0_57] : memref<1x8x16x128xf32, #tpu.memory_space<vmem>>, vector<1x8x16x128xf32>
    %95 = vector.shape_cast %94 : vector<1x8x16x128xf32> to vector<8x16x128xf32>
    %96 = vector.shape_cast %93 : vector<8x16x128xf32> to vector<1x8x16x128xf32>
    tpu.vector_store %arg8[%c0_54, %c0_55, %c0_56, %c0_57], %96 {strides = array<i32>} : memref<1x8x16x128xf32, #tpu.memory_space<vmem>>, vector<1x8x16x128xf32>,
    return
  }
  func.func @transform_0(%arg0: i32, %arg1: i32, %arg2: i32) -> (i32, i32, i32, i32) {
    %c0_i32 = arith.constant 0 : i32
    %c0_i32_0 = arith.constant 0 : i32
    return %arg0, %arg2, %c0_i32, %arg1 : i32, i32, i32, i32
  }
  func.func @transform_1(%arg0: i32, %arg1: i32, %arg2: i32) -> (i32, i32, i32, i32) {
    %c8_i32 = arith.constant 8 : i32
    %0 = arith.muli %arg2, %c8_i32 : i32
    %c1_i32 = arith.constant 1 : i32
    %1 = arith.subi %0, %c1_i32 : i32
    %c0_i32 = arith.constant 0 : i32
    %2 = arith.maxsi %1, %c0_i32 : i32
    %c0_i32_0 = arith.constant 0 : i32
    %c0_i32_1 = arith.constant 0 : i32
    return %arg0, %2, %c0_i32_0, %arg1 : i32, i32, i32, i32
  }
  func.func @transform_2(%arg0: i32, %arg1: i32, %arg2: i32) -> (i32, i32, i32, i32) {
    %c1_i32 = arith.constant 1 : i32
    %0 = arith.addi %arg2, %c1_i32 : i32
    %c8_i32 = arith.constant 8 : i32
    %1 = arith.muli %0, %c8_i32 : i32
    %c15_i32 = arith.constant 15 : i32
    %2 = arith.minsi %1, %c15_i32 : i32
    %c0_i32 = arith.constant 0 : i32
    %c0_i32_0 = arith.constant 0 : i32
    return %arg0, %2, %c0_i32, %arg1 : i32, i32, i32, i32
  }
  func.func @transform_3(%arg0: i32, %arg1: i32, %arg2: i32) -> (i32, i32, i32) {
    %c0_i32 = arith.constant 0 : i32
    %c0_i32_0 = arith.constant 0 : i32
    %c0_i32_1 = arith.constant 0 : i32
    return %c0_i32, %c0_i32_0, %arg1 : i32, i32, i32
  }
  func.func @transform_4(%arg0: i32, %arg1: i32, %arg2: i32) -> (i32, i32) {
    %c0_i32 = arith.constant 0 : i32
    %c0_i32_0 = arith.constant 0 : i32
    return %c0_i32, %arg1 : i32, i32
  }
  func.func @transform_5(%arg0: i32, %arg1: i32, %arg2: i32) -> (i32, i32, i32, i32) {
    %c0_i32 = arith.constant 0 : i32
    %c0_i32_0 = arith.constant 0 : i32
    return %arg0, %arg2, %c0_i32, %arg1 : i32, i32, i32, i32
  }
}

</mosaic_0001>

<llo_original>
// kernel: tpu_custom_call.1
$region0: #{tpu_custom_call.1}
  #allocation0 [shape = 'u32[]', space=smem, size = 0x4, offset = 0x4, fixed_abs, tag = 'smem constant byte address 0x4 - core index']
  #allocation1 [shape = 'u32[144,128]{1,0:T(1,128)}', space=vmem, size = 0x12000, scoped, tag = 'internal scratch']
  #allocation2 [shape = 'f32[10,18,128]{2,1,0:T(8,128)}', space=vmem, size = 0x1e000, scoped, tag = 'scratch operand']
  %s0 = inlined_call_operand.hbm [shape: f32[2,16,16,256], index: 0, kind: input, shape index: {}]
  %s1 = inlined_call_operand.hbm [shape: f32[2,16,16,256], index: 1, kind: input, shape index: {}]
  %s2 = inlined_call_operand.hbm [shape: f32[2,16,16,256], index: 2, kind: input, shape index: {}]
  %s3 = inlined_call_operand.hbm [shape: f32[3,3,256], index: 3, kind: input, shape index: {}]
  %s4 = inlined_call_operand.vmem [shape: f32[1,256], index: 4, kind: input, shape index: {}]
  %s5 = inlined_call_operand.hbm [shape: f32[2,16,16,256], index: 5, kind: output, shape index: {}]
  %s6 = sld [smem:[#allocation0]]
  $region69: #{tpu_custom_call.1} parent=0
    _
  %s8 = ssub.s32 1, %s6
  %s9 = scalar_select 0, %s8, %s6
  $region1: #{tpu_custom_call.1} parent=0
    #allocation3 [shape = 'u8[131072]{0}', space=vmem, size = 0x20000, scoped, tag = 'input window, operand 0']
    #allocation4 [shape = 's32[2]{0}', space=sflag, size = 0x8, scoped, tag = 'scoped memory for tpu_custom_call.1']
    #allocation5 [shape = 's32[2]{0}', space=sflag, size = 0x8, scoped, tag = 'scoped memory for tpu_custom_call.1']
    #allocation6 [shape = 'u8[16384]{0}', space=vmem, size = 0x4000, scoped, tag = 'input window, operand 1']
    #allocation7 [shape = 's32[2]{0}', space=sflag, size = 0x8, scoped, tag = 'scoped memory for tpu_custom_call.1']
    #allocation8 [shape = 'u8[16384]{0}', space=vmem, size = 0x4000, scoped, tag = 'input window, operand 2']
    #allocation9 [shape = 'u8[12288]{0}', space=vmem, size = 0x3000, scoped, tag = 'input window, operand 3']
    #allocation10 [shape = 's32[2]{0}', space=sflag, size = 0x8, scoped, tag = 'scoped memory for tpu_custom_call.1']
    #allocation11 [shape = 'u8[131072]{0}', space=vmem, size = 0x20000, scoped, tag = 'output window, operand 0']
    %10 = vsyncpa [#allocation4], 0
    %s11 = scalar_lea.sflag [#allocation4], 1
    %12 = vsyncpa %s11, 0
    %13 = vsyncpa [#allocation7], 0
    %s14 = scalar_lea.sflag [#allocation7], 1
    %15 = vsyncpa %s14, 0
    %16 = vsyncpa [#allocation10], 0
    %s17 = scalar_lea.sflag [#allocation10], 1
    %18 = vsyncpa %s17, 0
    %19 = vsyncpa [#allocation5], 0
    %s20 = scalar_lea.sflag [#allocation5], 1
    %21 = vsyncpa %s20, 0
    loop: start=0, step=1, limit=10
    $region2: #{tpu_custom_call.1} parent=1 // loop_pre_header
      _
    $region3: #{tpu_custom_call.1} parent=1 // loop_header
      %s23 = sphi 0, %s27
      %p24 = scmp.ge.s32.totalorder %s23, 10
      %s30 = sphi 0, %s49
      %s31 = sphi 0, %s45
      %s32 = sphi 0, %s41
      %s33 = sphi 0, %s30
      %s34 = sphi 0, %s31
      %s35 = sphi 0, %s32
      %s36 = sphi 0, %s33
      %s37 = sphi 0, %s34
      %s38 = sphi 0, %s35
      %s56 = sphi 0, %s58
      %s59 = sphi 0, %s56
      %s60 = sphi 0, %s59
      %s76 = sphi 0, %s60
      %s94 = sphi 0, %s96
      %s97 = sphi 0, %s94
      %s98 = sphi 0, %s97
      %s114 = sphi 0, %s98
      %s132 = sphi 0, %s134
      %s135 = sphi 0, %s132
      %s136 = sphi 0, %s135
      %s152 = sphi 0, %s136
      %s158 = sphi 0, %s160
      %s161 = sphi 0, %s158
      %s162 = sphi 0, %s161
      %s178 = sphi 0, %s162
      %s184 = sphi 0, %s186
      %s187 = sphi 0, %s184
      %s188 = sphi 0, %s187
      %s204 = sphi 0, %s188
      %s214 = sphi 0, %s216
      %s217 = sphi 0, %s214
      %s218 = sphi 0, %s217
      %s234 = sphi 0, %s218
    $region4: #{tpu_custom_call.1} parent=1 // loop_header_branch
      %26 = sbr.rel (%p24) target = $region8
    $region5: #{tpu_custom_call.1} parent=1 // loop_body
      %s28 = ssub.s32 %s23, 1
      %s29 = ssub.s32 %s23, 2
      %s39 = sadd.s32 1, %s32
      %p40 = scmp.ge.s32.totalorder %s39, 2
      %s41 = scalar_select %p40, 0, %s39
      %s42 = sadd.s32 1, %s31
      %s43 = scalar_select %p40, %s42, %s31
      %p44 = scmp.ge.s32.totalorder %s43, 2
      %s45 = scalar_select %p44, 0, %s43
      %s46 = sadd.s32 1, %s30
      %s47 = scalar_select %p44, %s46, %s30
      %p48 = scmp.ge.s32.totalorder %s47, 2
      %s49 = scalar_select %p48, 0, %s47
      %s50 = ssub.s32 %s30, %s49
      %s51 = ssub.s32 %s32, %s41
      %s52 = sor.u32 %s50, %s51
      %s53 = ssub.s32 %s31, %s45
      %s54 = sor.u32 %s52, %s53
      %p55 = scmp.eq.s32.totalorder %s54, 0
      %s57 = sadd.s32 %s56, 1
      %s58 = scalar_select %p55, %s56, %s57
      %p61 = pneg %p55
      %p62 = scmp.eq.s32.totalorder %s23, 7
      %p63 = por %p61, %p62
      %p64 = scmp.ne.s32.totalorder %s56, %s59
      %p65 = scmp.eq.s32.totalorder %s23, 0
      %p66 = por %p64, %p65
      %p67 = scmp.ne.s32.totalorder %s56, %s59
      %p68 = scmp.eq.s32.totalorder %s28, 7
      %p69 = por %p67, %p68
      %p70 = scmp.ne.s32.totalorder %s59, %s60
      %p71 = scmp.eq.s32.totalorder %s28, 0
      %p72 = por %p70, %p71
      %p73 = scmp.ne.s32.totalorder %s59, %s60
      %p74 = scmp.eq.s32.totalorder %s29, 7
      %p75 = por %p73, %p74
      %p77 = scmp.ne.s32.totalorder %s60, %s76
      %p78 = scmp.eq.s32.totalorder %s29, 0
      %p79 = por %p77, %p78
      %s80 = smul.u32 %s32, 8
      %s81 = ssub.s32 %s80, 1
      %p82 = scmp.gt.s32.totalorder %s81, 0
      %s83 = scalar_select %p82, %s81, 0
      %s84 = smul.u32 %s41, 8
      %s85 = ssub.s32 %s84, 1
      %p86 = scmp.gt.s32.totalorder %s85, 0
      %s87 = scalar_select %p86, %s85, 0
      %s88 = ssub.s32 %s30, %s49
      %s89 = ssub.s32 %s83, %s87
      %s90 = sor.u32 %s88, %s89
      %s91 = ssub.s32 %s31, %s45
      %s92 = sor.u32 %s90, %s91
      %p93 = scmp.eq.s32.totalorder %s92, 0
      %s95 = sadd.s32 %s94, 1
      %s96 = scalar_select %p93, %s94, %s95
      %p99 = pneg %p93
      %p100 = scmp.eq.s32.totalorder %s23, 7
      %p101 = por %p99, %p100
      %p102 = scmp.ne.s32.totalorder %s94, %s97
      %p103 = scmp.eq.s32.totalorder %s23, 0
      %p104 = por %p102, %p103
      %p105 = scmp.ne.s32.totalorder %s94, %s97
      %p106 = scmp.eq.s32.totalorder %s28, 7
      %p107 = por %p105, %p106
      %p108 = scmp.ne.s32.totalorder %s97, %s98
      %p109 = scmp.eq.s32.totalorder %s28, 0
      %p110 = por %p108, %p109
      %p111 = scmp.ne.s32.totalorder %s97, %s98
      %p112 = scmp.eq.s32.totalorder %s29, 7
      %p113 = por %p111, %p112
      %p115 = scmp.ne.s32.totalorder %s98, %s114
      %p116 = scmp.eq.s32.totalorder %s29, 0
      %p117 = por %p115, %p116
      %s118 = sadd.s32 %s32, 1
      %s119 = smul.u32 %s118, 8
      %p120 = scmp.lt.s32.totalorder %s119, 15
      %s121 = scalar_select %p120, %s119, 15
      %s122 = sadd.s32 %s41, 1
      %s123 = smul.u32 %s122, 8
      %p124 = scmp.lt.s32.totalorder %s123, 15
      %s125 = scalar_select %p124, %s123, 15
      %s126 = ssub.s32 %s30, %s49
      %s127 = ssub.s32 %s121, %s125
      %s128 = sor.u32 %s126, %s127
      %s129 = ssub.s32 %s31, %s45
      %s130 = sor.u32 %s128, %s129
      %p131 = scmp.eq.s32.totalorder %s130, 0
      %s133 = sadd.s32 %s132, 1
      %s134 = scalar_select %p131, %s132, %s133
      %p137 = pneg %p131
      %p138 = scmp.eq.s32.totalorder %s23, 7
      %p139 = por %p137, %p138
      %p140 = scmp.ne.s32.totalorder %s132, %s135
      %p141 = scmp.eq.s32.totalorder %s23, 0
      %p142 = por %p140, %p141
      %p143 = scmp.ne.s32.totalorder %s132, %s135
      %p144 = scmp.eq.s32.totalorder %s28, 7
      %p145 = por %p143, %p144
      %p146 = scmp.ne.s32.totalorder %s135, %s136
      %p147 = scmp.eq.s32.totalorder %s28, 0
      %p148 = por %p146, %p147
      %p149 = scmp.ne.s32.totalorder %s135, %s136
      %p150 = scmp.eq.s32.totalorder %s29, 7
      %p151 = por %p149, %p150
      %p153 = scmp.ne.s32.totalorder %s136, %s152
      %p154 = scmp.eq.s32.totalorder %s29, 0
      %p155 = por %p153, %p154
      %s156 = ssub.s32 %s31, %s45
      %p157 = scmp.eq.s32.totalorder %s156, 0
      %s159 = sadd.s32 %s158, 1
      %s160 = scalar_select %p157, %s158, %s159
      %p163 = pneg %p157
      %p164 = scmp.eq.s32.totalorder %s23, 7
      %p165 = por %p163, %p164
      %p166 = scmp.ne.s32.totalorder %s158, %s161
      %p167 = scmp.eq.s32.totalorder %s23, 0
      %p168 = por %p166, %p167
      %p169 = scmp.ne.s32.totalorder %s158, %s161
      %p170 = scmp.eq.s32.totalorder %s28, 7
      %p171 = por %p169, %p170
      %p172 = scmp.ne.s32.totalorder %s161, %s162
      %p173 = scmp.eq.s32.totalorder %s28, 0
      %p174 = por %p172, %p173
      %p175 = scmp.ne.s32.totalorder %s161, %s162
      %p176 = scmp.eq.s32.totalorder %s29, 7
      %p177 = por %p175, %p176
      %p179 = scmp.ne.s32.totalorder %s162, %s178
      %p180 = scmp.eq.s32.totalorder %s29, 0
      %p181 = por %p179, %p180
      %s182 = ssub.s32 %s31, %s45
      %p183 = scmp.eq.s32.totalorder %s182, 0
      %s185 = sadd.s32 %s184, 1
      %s186 = scalar_select %p183, %s184, %s185
      %p189 = pneg %p183
      %p190 = scmp.eq.s32.totalorder %s23, 7
      %p191 = por %p189, %p190
      %p192 = scmp.ne.s32.totalorder %s184, %s187
      %p193 = scmp.eq.s32.totalorder %s23, 0
      %p194 = por %p192, %p193
      %p195 = scmp.ne.s32.totalorder %s184, %s187
      %p196 = scmp.eq.s32.totalorder %s28, 7
      %p197 = por %p195, %p196
      %p198 = scmp.ne.s32.totalorder %s187, %s188
      %p199 = scmp.eq.s32.totalorder %s28, 0
      %p200 = por %p198, %p199
      %p201 = scmp.ne.s32.totalorder %s187, %s188
      %p202 = scmp.eq.s32.totalorder %s29, 7
      %p203 = por %p201, %p202
      %p205 = scmp.ne.s32.totalorder %s188, %s204
      %p206 = scmp.eq.s32.totalorder %s29, 0
      %p207 = por %p205, %p206
      %s208 = ssub.s32 %s30, %s49
      %s209 = ssub.s32 %s32, %s41
      %s210 = sor.u32 %s208, %s209
      %s211 = ssub.s32 %s31, %s45
      %s212 = sor.u32 %s210, %s211
      %p213 = scmp.eq.s32.totalorder %s212, 0
      %s215 = sadd.s32 %s214, 1
      %s216 = scalar_select %p213, %s214, %s215
      %p219 = pneg %p213
      %p220 = scmp.eq.s32.totalorder %s23, 7
      %p221 = por %p219, %p220
      %p222 = scmp.ne.s32.totalorder %s214, %s217
      %p223 = scmp.eq.s32.totalorder %s23, 0
      %p224 = por %p222, %p223
      %p225 = scmp.ne.s32.totalorder %s214, %s217
      %p226 = scmp.eq.s32.totalorder %s28, 7
      %p227 = por %p225, %p226
      %p228 = scmp.ne.s32.totalorder %s217, %s218
      %p229 = scmp.eq.s32.totalorder %s28, 0
      %p230 = por %p228, %p229
      %p231 = scmp.ne.s32.totalorder %s217, %s218
      %p232 = scmp.eq.s32.totalorder %s29, 7
      %p233 = por %p231, %p232
      %p235 = scmp.ne.s32.totalorder %s218, %s234
      %p236 = scmp.eq.s32.totalorder %s29, 0
      %p237 = por %p235, %p236
      %p238 = scmp.le.s32.totalorder 1, %s23
      %p239 = scmp.lt.s32.totalorder %s23, 9
      %p240 = pnand %p238, %p239
      %p241 = pneg %p240
      // Predicated region
      $region9: #{tpu_custom_call.1} parent=5 // pred_check
        _
      $region10: #{tpu_custom_call.1} parent=5 // pred_check_branch
        %243 = sbr.rel (%p240) target = $region12
      $region11: #{tpu_custom_call.1} parent=5 // pred_region
        %s244 = ssub.s32 %s23, 1
      $region12: #{tpu_custom_call.1} parent=5 // pred_fallthru
        _
      %p245 = scmp.lt.s32.totalorder %s23, 8
      // Predicated region
      $region13: #{tpu_custom_call.1} parent=5 // pred_check
        %p246 = pneg %p245
      $region14: #{tpu_custom_call.1} parent=5 // pred_check_branch
        %248 = sbr.rel (%p246) target = $region16
      $region15: #{tpu_custom_call.1} parent=5 // pred_region
        // Predicated region
        $region17: #{tpu_custom_call.1} parent=15 // pred_check
          %p249 = pneg %p66
        $region18: #{tpu_custom_call.1} parent=15 // pred_check_branch
          %251 = sbr.rel (%p249) target = $region20
        $region19: #{tpu_custom_call.1} parent=15 // pred_region
          %s252 = sand.u32 %s56, 1
          %s253 = scalar_lea.sflag [#allocation4], %s252
          %s254 = sand.u32 %s56, 1
          %s255 = smul.addr %s254, 128
          %s256 = scalar_lea.vmem [#allocation3], %s255
          %s257 = smul.u32 8, %s32
          %s259 = ssub.s32 2048, 2048
          %260 = vsyncadd %s253, %s259
          %s261 = smul.addr %s257, 4
          %s262 = sadd.s32 %s31, %s261
          %s263 = smul.addr %s30, 64
          %s264 = sadd.s32 %s262, %s263
          %s265 = smul.addr %s264, 128
          %s266 = scalar_lea.hbm %s0, %s265
          %s267 = sshll.u32 %s256, 4
          %s268 = int_to_ptr.vmem [resolvable:$true] %s267
          %273 = dma.hbm_to_vmem [thread:$0]  %s266, 2048, %s268, %s253, 256, 128, 8
        $region20: #{tpu_custom_call.1} parent=15 // pred_fallthru
          _
        // Predicated region
        $region21: #{tpu_custom_call.1} parent=15 // pred_check
          %p274 = pneg %p104
        $region22: #{tpu_custom_call.1} parent=15 // pred_check_branch
          %276 = sbr.rel (%p274) target = $region24
        $region23: #{tpu_custom_call.1} parent=15 // pred_region
          %s277 = sand.u32 %s23, 1
          %s278 = scalar_lea.sflag [#allocation7], %s277
          %s279 = sand.u32 %s94, 1
          %s280 = smul.addr %s279, 16
          %s281 = scalar_lea.vmem [#allocation6], %s280
          %s282 = smul.u32 %s32, 8
          %s283 = ssub.s32 %s282, 1
          %p284 = scmp.gt.s32.totalorder %s283, 0
          %s285 = scalar_select %p284, %s283, 0
          %s287 = ssub.s32 256, 256
          %288 = vsyncadd %s278, %s287
          %s289 = smul.addr %s285, 4
          %s290 = sadd.s32 %s31, %s289
          %s291 = smul.addr %s30, 64
          %s292 = sadd.s32 %s290, %s291
          %s293 = smul.addr %s292, 128
          %s294 = scalar_lea.hbm %s1, %s293
          %s295 = sshll.u32 %s281, 4
          %s296 = int_to_ptr.vmem [resolvable:$true] %s295
          %301 = dma.hbm_to_vmem [thread:$0]  %s294, 256, %s296, %s278, 256, 128, 8
        $region24: #{tpu_custom_call.1} parent=15 // pred_fallthru
          _
        // Predicated region
        $region25: #{tpu_custom_call.1} parent=15 // pred_check
          %p302 = pneg %p142
        $region26: #{tpu_custom_call.1} parent=15 // pred_check_branch
          %304 = sbr.rel (%p302) target = $region28
        $region27: #{tpu_custom_call.1} parent=15 // pred_region
          %s305 = sand.u32 %s23, 1
          %s306 = scalar_lea.sflag [#allocation7], %s305
          %s307 = sand.u32 %s132, 1
          %s308 = smul.addr %s307, 16
          %s309 = scalar_lea.vmem [#allocation8], %s308
          %s310 = sadd.s32 %s32, 1
          %s311 = smul.u32 %s310, 8
          %p312 = scmp.lt.s32.totalorder %s311, 15
          %s313 = scalar_select %p312, %s311, 15
          %s315 = ssub.s32 256, 256
          %316 = vsyncadd %s306, %s315
          %s317 = smul.addr %s313, 4
          %s318 = sadd.s32 %s31, %s317
          %s319 = smul.addr %s30, 64
          %s320 = sadd.s32 %s318, %s319
          %s321 = smul.addr %s320, 128
          %s322 = scalar_lea.hbm %s2, %s321
          %s323 = sshll.u32 %s309, 4
          %s324 = int_to_ptr.vmem [resolvable:$true] %s323
          %329 = dma.hbm_to_vmem [thread:$0]  %s322, 256, %s324, %s306, 256, 128, 8
        $region28: #{tpu_custom_call.1} parent=15 // pred_fallthru
          _
        // Predicated region
        $region29: #{tpu_custom_call.1} parent=15 // pred_check
          %p330 = pneg %p168
        $region30: #{tpu_custom_call.1} parent=15 // pred_check_branch
          %332 = sbr.rel (%p330) target = $region32
        $region31: #{tpu_custom_call.1} parent=15 // pred_region
          %s333 = sand.u32 %s158, 1
          %s334 = scalar_lea.sflag [#allocation10], %s333
          %s335 = sand.u32 %s158, 1
          %s336 = smul.addr %s335, 12
          %s337 = scalar_lea.vmem [#allocation9], %s336
          %s339 = ssub.s32 192, 192
          %340 = vsyncadd %s334, %s339
          %s341 = smul.addr %s31, 64
          %s342 = scalar_lea.hbm %s3, %s341
          %s343 = sshll.u32 %s337, 4
          %s344 = int_to_ptr.vmem [resolvable:$true] %s343
          %349 = dma.hbm_to_vmem [thread:$0]  %s342, 192, %s344, %s334, 128, 64, 4
        $region32: #{tpu_custom_call.1} parent=15 // pred_fallthru
          _
        // Predicated region
        $region33: #{tpu_custom_call.1} parent=15 // pred_check
          %p350 = pneg %p194
        $region34: #{tpu_custom_call.1} parent=15 // pred_check_branch
          %352 = sbr.rel (%p350) target = $region36
        $region35: #{tpu_custom_call.1} parent=15 // pred_region
          %p353 = scmp.lt.s32.totalorder %s31, 1
          %s354 = scalar_select %p353, %s31, 1
          %s355 = scalar_lea.vmem %s4, %s354
        $region36: #{tpu_custom_call.1} parent=15 // pred_fallthru
          _
      $region16: #{tpu_custom_call.1} parent=5 // pred_fallthru
        _
      %p356 = scmp.le.s32.totalorder 1, %s23
      %p357 = scmp.lt.s32.totalorder %s23, 9
      %p358 = pnand %p356, %p357
      %p359 = pneg %p358
      // Predicated region
      $region37: #{tpu_custom_call.1} parent=5 // pred_check
        _
      $region38: #{tpu_custom_call.1} parent=5 // pred_check_branch
        %361 = sbr.rel (%p358) target = $region40
      $region39: #{tpu_custom_call.1} parent=5 // pred_region
        %s362 = ssub.s32 %s23, 1
        %s363 = sand.u32 %s59, 1
        %s364 = scalar_lea.sflag [#allocation4], %s363
        %s365 = sand.u32 %s59, 1
        %s366 = smul.addr %s365, 128
        %s367 = scalar_lea.vmem [#allocation3], %s366
        // Predicated region
        $region41: #{tpu_custom_call.1} parent=39 // pred_check
          %p368 = pneg %p72
        $region42: #{tpu_custom_call.1} parent=39 // pred_check_branch
          %370 = sbr.rel (%p368) target = $region44
        $region43: #{tpu_custom_call.1} parent=39 // pred_region
          %371 = dma.done %s364, 2048
        $region44: #{tpu_custom_call.1} parent=39 // pred_fallthru
          _
        %s372 = sand.u32 %s28, 1
        %s373 = scalar_lea.sflag [#allocation7], %s372
        %s374 = sand.u32 %s97, 1
        %s375 = smul.addr %s374, 16
        %s376 = scalar_lea.vmem [#allocation6], %s375
        // Predicated region
        $region45: #{tpu_custom_call.1} parent=39 // pred_check
          %p377 = pneg %p110
        $region46: #{tpu_custom_call.1} parent=39 // pred_check_branch
          %379 = sbr.rel (%p377) target = $region48
        $region47: #{tpu_custom_call.1} parent=39 // pred_region
          %380 = dma.done %s373, 256
        $region48: #{tpu_custom_call.1} parent=39 // pred_fallthru
          _
        %s381 = sand.u32 %s28, 1
        %s382 = scalar_lea.sflag [#allocation7], %s381
        %s383 = sand.u32 %s135, 1
        %s384 = smul.addr %s383, 16
        %s385 = scalar_lea.vmem [#allocation8], %s384
        // Predicated region
        $region49: #{tpu_custom_call.1} parent=39 // pred_check
          %p386 = pneg %p148
        $region50: #{tpu_custom_call.1} parent=39 // pred_check_branch
          %388 = sbr.rel (%p386) target = $region52
        $region51: #{tpu_custom_call.1} parent=39 // pred_region
          %389 = dma.done %s382, 256
        $region52: #{tpu_custom_call.1} parent=39 // pred_fallthru
          _
        %s390 = sand.u32 %s161, 1
        %s391 = scalar_lea.sflag [#allocation10], %s390
        %s392 = sand.u32 %s161, 1
        %s393 = smul.addr %s392, 12
        %s394 = scalar_lea.vmem [#allocation9], %s393
        // Predicated region
        $region53: #{tpu_custom_call.1} parent=39 // pred_check
          %p395 = pneg %p174
        $region54: #{tpu_custom_call.1} parent=39 // pred_check_branch
          %397 = sbr.rel (%p395) target = $region56
        $region55: #{tpu_custom_call.1} parent=39 // pred_region
          %398 = dma.done %s391, 192
        $region56: #{tpu_custom_call.1} parent=39 // pred_fallthru
          _
        %s399 = sand.u32 %s59, 1
        %s400 = scalar_lea.sflag [#allocation4], %s399
        %s401 = sand.u32 %s59, 1
        %s402 = smul.addr %s401, 128
        %s403 = scalar_lea.vmem [#allocation3], %s402
        %p404 = pneg %p72
        %p405 = pneg %p69
        %s406 = sand.u32 %s28, 1
        %s407 = scalar_lea.sflag [#allocation7], %s406
        %s408 = sand.u32 %s97, 1
        %s409 = smul.addr %s408, 16
        %s410 = scalar_lea.vmem [#allocation6], %s409
        %p411 = pneg %p110
        %p412 = pneg %p107
        %s413 = sand.u32 %s28, 1
        %s414 = scalar_lea.sflag [#allocation7], %s413
        %s415 = sand.u32 %s135, 1
        %s416 = smul.addr %s415, 16
        %s417 = scalar_lea.vmem [#allocation8], %s416
        %p418 = pneg %p148
        %p419 = pneg %p145
        %s420 = sand.u32 %s161, 1
        %s421 = scalar_lea.sflag [#allocation10], %s420
        %s422 = sand.u32 %s161, 1
        %s423 = smul.addr %s422, 12
        %s424 = scalar_lea.vmem [#allocation9], %s423
        %p425 = pneg %p174
        %p426 = pneg %p171
        %p427 = scmp.lt.s32.totalorder %s34, 1
        %s428 = scalar_select %p427, %s34, 1
        %s429 = scalar_lea.vmem %s4, %s428
        %p430 = pneg %p200
        %p431 = pneg %p197
        %p432 = pneg %p230
        %p433 = pneg %p227
        %s434 = sand.u32 %s217, 1
        %s435 = scalar_lea.sflag [#allocation5], %s434
        %s436 = sand.u32 %s217, 1
        %s437 = smul.addr %s436, 128
        %s438 = scalar_lea.vmem [#allocation11], %s437
        %s439 = smul.u32 8, %s35
        %s440 = smul.u32 %s35, 8
        %s441 = ssub.s32 %s440, 1
        %p442 = scmp.gt.s32.totalorder %s441, 0
        %s443 = scalar_select %p442, %s441, 0
        %s444 = sadd.s32 %s35, 1
        %s445 = smul.u32 %s444, 8
        %p446 = scmp.lt.s32.totalorder %s445, 15
        %s447 = scalar_select %p446, %s445, 15
        %p448 = scmp.lt.s32.totalorder %s34, 1
        %s449 = scalar_select %p448, %s34, 1
        %s450 = scalar_lea.vmem %s4, %s449
        %s451 = smul.u32 8, %s35
        %452 = vst [vmem:[#allocation2] sm:$0x1] 0.0
        %453 = vst [vmem:[#allocation2 + $0x18] sm:$0x1] 0.0
        %454 = vst [vmem:[#allocation2 + $0x30] sm:$0x1] 0.0
        %455 = vst [vmem:[#allocation2 + $0x48] sm:$0x1] 0.0
        %456 = vst [vmem:[#allocation2 + $0x60] sm:$0x1] 0.0
        %457 = vst [vmem:[#allocation2 + $0x78] sm:$0x1] 0.0
        %458 = vst [vmem:[#allocation2 + $0x90] sm:$0x1] 0.0
        %459 = vst [vmem:[#allocation2 + $0xa8] sm:$0x1] 0.0
        %460 = vst [vmem:[#allocation2 + $0xc0] sm:$0x1] 0.0
        %461 = vst [vmem:[#allocation2 + $0xd8] sm:$0x1] 0.0
        %462 = vst [vmem:[#allocation2 + $0x11] sm:$0x1] 0.0
        %463 = vst [vmem:[#allocation2 + $0x29] sm:$0x1] 0.0
        %464 = vst [vmem:[#allocation2 + $0x41] sm:$0x1] 0.0
        %465 = vst [vmem:[#allocation2 + $0x59] sm:$0x1] 0.0
        %466 = vst [vmem:[#allocation2 + $0x71] sm:$0x1] 0.0
        %467 = vst [vmem:[#allocation2 + $0x89] sm:$0x1] 0.0
        %468 = vst [vmem:[#allocation2 + $0xa1] sm:$0x1] 0.0
        %469 = vst [vmem:[#allocation2 + $0xb9] sm:$0x1] 0.0
        %470 = vst [vmem:[#allocation2 + $0xd1] sm:$0x1] 0.0
        %471 = vst [vmem:[#allocation2 + $0xe9] sm:$0x1] 0.0
        %v472 = vld [vmem:[%s367] sm:$0xff]
        %v473 = vld [vmem:[%s367 + $0x8] sm:$0xff]
        %v474 = vld [vmem:[%s367 + $0x10] sm:$0xff]
        %v475 = vld [vmem:[%s367 + $0x18] sm:$0xff]
        %v476 = vld [vmem:[%s367 + $0x20] sm:$0xff]
        %v477 = vld [vmem:[%s367 + $0x28] sm:$0xff]
        %v478 = vld [vmem:[%s367 + $0x30] sm:$0xff]
        %v479 = vld [vmem:[%s367 + $0x38] sm:$0xff]
        %v480 = vld [vmem:[%s367 + $0x40] sm:$0xff]
        %v481 = vld [vmem:[%s367 + $0x48] sm:$0xff]
        %v482 = vld [vmem:[%s367 + $0x50] sm:$0xff]
        %v483 = vld [vmem:[%s367 + $0x58] sm:$0xff]
        %v484 = vld [vmem:[%s367 + $0x60] sm:$0xff]
        %v485 = vld [vmem:[%s367 + $0x68] sm:$0xff]
        %v486 = vld [vmem:[%s367 + $0x70] sm:$0xff]
        %v487 = vld [vmem:[%s367 + $0x78] sm:$0xff]
        %s488 = scalar_lea.vmem [#allocation2], 24
        %489 = vst [vmem:[%s488 + $0x1] sm:$0xff] %v472
        %490 = vst [vmem:[%s488 + $0x9] sm:$0xff] %v473
        %491 = vst [vmem:[%s488 + $0x19] sm:$0xff] %v474
        %492 = vst [vmem:[%s488 + $0x21] sm:$0xff] %v475
        %493 = vst [vmem:[%s488 + $0x31] sm:$0xff] %v476
        %494 = vst [vmem:[%s488 + $0x39] sm:$0xff] %v477
        %495 = vst [vmem:[%s488 + $0x49] sm:$0xff] %v478
        %496 = vst [vmem:[%s488 + $0x51] sm:$0xff] %v479
        %497 = vst [vmem:[%s488 + $0x61] sm:$0xff] %v480
        %498 = vst [vmem:[%s488 + $0x69] sm:$0xff] %v481
        %499 = vst [vmem:[%s488 + $0x79] sm:$0xff] %v482
        %500 = vst [vmem:[%s488 + $0x81] sm:$0xff] %v483
        %501 = vst [vmem:[%s488 + $0x91] sm:$0xff] %v484
        %502 = vst [vmem:[%s488 + $0x99] sm:$0xff] %v485
        %503 = vst [vmem:[%s488 + $0xa9] sm:$0xff] %v486
        %504 = vst [vmem:[%s488 + $0xb1] sm:$0xff] %v487
        %p505 = scmp.gt.s32.totalorder %s35, 0
        %s506 = scalar_select %p505, 1, 0
        %s507 = scvt.s32.f32 %s506
        %p508 = scmp.lt.s32.totalorder %s35, 1
        %s509 = scalar_select %p508, 1, 0
        %s510 = scvt.s32.f32 %s509
        %v511 = vld [vmem:[%s376] sm:$0xff]
        %v512 = vld [vmem:[%s376 + $0x8] sm:$0xff]
        %v513 = vstv %s507
        %v514 = vmul.f32 %v511, %v513
        %v515 = vmul.f32 %v512, %v513
        %516 = vst [vmem:[#allocation2 + $0x1] sm:$0xff] %v514
        %517 = vst [vmem:[#allocation2 + $0x9] sm:$0xff] %v515
        %v518 = vld [vmem:[%s385] sm:$0xff]
        %v519 = vld [vmem:[%s385 + $0x8] sm:$0xff]
        %v520 = vstv %s510
        %v521 = vmul.f32 %v518, %v520
        %v522 = vmul.f32 %v519, %v520
        %s523 = scalar_lea.vmem [#allocation2], 216
        %524 = vst [vmem:[%s523 + $0x1] sm:$0xff] %v521
        %525 = vst [vmem:[%s523 + $0x9] sm:$0xff] %v522
        %v526 = vld [vmem:[%s394] sm:$0x7]
        %v527 = vld [vmem:[%s394 + $0x4] sm:$0x7]
        %v528 = vld [vmem:[%s394 + $0x8] sm:$0x7]
        %v529 = vld [vmem:[%s450] sm:$0x1]
        %v530 = vld [vmem:[#allocation2] sm:$0xff]
        %v531 = vld [vmem:[#allocation2 + $0x8] sm:$0xff]
        %v532 = vld [vmem:[#allocation2 + $0x18] sm:$0xff]
        %v533 = vld [vmem:[#allocation2 + $0x20] sm:$0xff]
        %v534 = vld [vmem:[#allocation2 + $0x30] sm:$0xff]
        %v535 = vld [vmem:[#allocation2 + $0x38] sm:$0xff]
        %v536 = vld [vmem:[#allocation2 + $0x48] sm:$0xff]
        %v537 = vld [vmem:[#allocation2 + $0x50] sm:$0xff]
        %v538 = vld [vmem:[#allocation2 + $0x60] sm:$0xff]
        %v539 = vld [vmem:[#allocation2 + $0x68] sm:$0xff]
        %v540 = vld [vmem:[#allocation2 + $0x78] sm:$0xff]
        %v541 = vld [vmem:[#allocation2 + $0x80] sm:$0xff]
        %v542 = vld [vmem:[#allocation2 + $0x90] sm:$0xff]
        %v543 = vld [vmem:[#allocation2 + $0x98] sm:$0xff]
        %v544 = vld [vmem:[#allocation2 + $0xa8] sm:$0xff]
        %v545 = vld [vmem:[#allocation2 + $0xb0] sm:$0xff]
        %v546 = vlaneseq
        %v547 = vshrl.u32 %v546, 7
        %v548 = vsub.s32 0, %v547
        %v549 = vrot.slane %v526, %v548
        %v550 = vmul.f32 %v530, %v549
        %v551 = vmul.f32 %v531, %v549
        %v552 = vmul.f32 %v532, %v549
        %v553 = vmul.f32 %v533, %v549
        %v554 = vmul.f32 %v534, %v549
        %v555 = vmul.f32 %v535, %v549
        %v556 = vmul.f32 %v536, %v549
        %v557 = vmul.f32 %v537, %v549
        %v558 = vmul.f32 %v538, %v549
        %v559 = vmul.f32 %v539, %v549
        %v560 = vmul.f32 %v540, %v549
        %v561 = vmul.f32 %v541, %v549
        %v562 = vmul.f32 %v542, %v549
        %v563 = vmul.f32 %v543, %v549
        %v564 = vmul.f32 %v544, %v549
        %v565 = vmul.f32 %v545, %v549
        %v566 = vld [vmem:[#allocation2 + $0x1] sm:$0xff]
        %v567 = vld [vmem:[#allocation2 + $0x9] sm:$0xff]
        %v568 = vld [vmem:[#allocation2 + $0x19] sm:$0xff]
        %v569 = vld [vmem:[#allocation2 + $0x21] sm:$0xff]
        %v570 = vld [vmem:[#allocation2 + $0x31] sm:$0xff]
        %v571 = vld [vmem:[#allocation2 + $0x39] sm:$0xff]
        %v572 = vld [vmem:[#allocation2 + $0x49] sm:$0xff]
        %v573 = vld [vmem:[#allocation2 + $0x51] sm:$0xff]
        %v574 = vld [vmem:[#allocation2 + $0x61] sm:$0xff]
        %v575 = vld [vmem:[#allocation2 + $0x69] sm:$0xff]
        %v576 = vld [vmem:[#allocation2 + $0x79] sm:$0xff]
        %v577 = vld [vmem:[#allocation2 + $0x81] sm:$0xff]
        %v578 = vld [vmem:[#allocation2 + $0x91] sm:$0xff]
        %v579 = vld [vmem:[#allocation2 + $0x99] sm:$0xff]
        %v580 = vld [vmem:[#allocation2 + $0xa9] sm:$0xff]
        %v581 = vld [vmem:[#allocation2 + $0xb1] sm:$0xff]
        %v582 = vlaneseq
        %v583 = vshrl.u32 %v582, 7
        %v584 = vsub.s32 1, %v583
        %v585 = vrot.slane %v526, %v584
        %v586 = vmul.f32 %v566, %v585
        %v587 = vmul.f32 %v567, %v585
        %v588 = vmul.f32 %v568, %v585
        %v589 = vmul.f32 %v569, %v585
        %v590 = vmul.f32 %v570, %v585
        %v591 = vmul.f32 %v571, %v585
        %v592 = vmul.f32 %v572, %v585
        %v593 = vmul.f32 %v573, %v585
        %v594 = vmul.f32 %v574, %v585
        %v595 = vmul.f32 %v575, %v585
        %v596 = vmul.f32 %v576, %v585
        %v597 = vmul.f32 %v577, %v585
        %v598 = vmul.f32 %v578, %v585
        %v599 = vmul.f32 %v579, %v585
        %v600 = vmul.f32 %v580, %v585
        %v601 = vmul.f32 %v581, %v585
        %v602 = vadd.f32 %v550, %v586
        %v603 = vadd.f32 %v551, %v587
        %v604 = vadd.f32 %v552, %v588
        %v605 = vadd.f32 %v553, %v589
        %v606 = vadd.f32 %v554, %v590
        %v607 = vadd.f32 %v555, %v591
        %v608 = vadd.f32 %v556, %v592
        %v609 = vadd.f32 %v557, %v593
        %v610 = vadd.f32 %v558, %v594
        %v611 = vadd.f32 %v559, %v595
        %v612 = vadd.f32 %v560, %v596
        %v613 = vadd.f32 %v561, %v597
        %v614 = vadd.f32 %v562, %v598
        %v615 = vadd.f32 %v563, %v599
        %v616 = vadd.f32 %v564, %v600
        %v617 = vadd.f32 %v565, %v601
        %v618 = vld [vmem:[#allocation2 + $0x2] sm:$0xff]
        %v619 = vld [vmem:[#allocation2 + $0xa] sm:$0xff]
        %v620 = vld [vmem:[#allocation2 + $0x1a] sm:$0xff]
        %v621 = vld [vmem:[#allocation2 + $0x22] sm:$0xff]
        %v622 = vld [vmem:[#allocation2 + $0x32] sm:$0xff]
        %v623 = vld [vmem:[#allocation2 + $0x3a] sm:$0xff]
        %v624 = vld [vmem:[#allocation2 + $0x4a] sm:$0xff]
        %v625 = vld [vmem:[#allocation2 + $0x52] sm:$0xff]
        %v626 = vld [vmem:[#allocation2 + $0x62] sm:$0xff]
        %v627 = vld [vmem:[#allocation2 + $0x6a] sm:$0xff]
        %v628 = vld [vmem:[#allocation2 + $0x7a] sm:$0xff]
        %v629 = vld [vmem:[#allocation2 + $0x82] sm:$0xff]
        %v630 = vld [vmem:[#allocation2 + $0x92] sm:$0xff]
        %v631 = vld [vmem:[#allocation2 + $0x9a] sm:$0xff]
        %v632 = vld [vmem:[#allocation2 + $0xaa] sm:$0xff]
        %v633 = vld [vmem:[#allocation2 + $0xb2] sm:$0xff]
        %v634 = vlaneseq
        %v635 = vshrl.u32 %v634, 7
        %v636 = vsub.s32 2, %v635
        %v637 = vrot.slane %v526, %v636
        %v638 = vmul.f32 %v618, %v637
        %v639 = vmul.f32 %v619, %v637
        %v640 = vmul.f32 %v620, %v637
        %v641 = vmul.f32 %v621, %v637
        %v642 = vmul.f32 %v622, %v637
        %v643 = vmul.f32 %v623, %v637
        %v644 = vmul.f32 %v624, %v637
        %v645 = vmul.f32 %v625, %v637
        %v646 = vmul.f32 %v626, %v637
        %v647 = vmul.f32 %v627, %v637
        %v648 = vmul.f32 %v628, %v637
        %v649 = vmul.f32 %v629, %v637
        %v650 = vmul.f32 %v630, %v637
        %v651 = vmul.f32 %v631, %v637
        %v652 = vmul.f32 %v632, %v637
        %v653 = vmul.f32 %v633, %v637
        %v654 = vadd.f32 %v602, %v638
        %v655 = vadd.f32 %v603, %v639
        %v656 = vadd.f32 %v604, %v640
        %v657 = vadd.f32 %v605, %v641
        %v658 = vadd.f32 %v606, %v642
        %v659 = vadd.f32 %v607, %v643
        %v660 = vadd.f32 %v608, %v644
        %v661 = vadd.f32 %v609, %v645
        %v662 = vadd.f32 %v610, %v646
        %v663 = vadd.f32 %v611, %v647
        %v664 = vadd.f32 %v612, %v648
        %v665 = vadd.f32 %v613, %v649
        %v666 = vadd.f32 %v614, %v650
        %v667 = vadd.f32 %v615, %v651
        %v668 = vadd.f32 %v616, %v652
        %v669 = vadd.f32 %v617, %v653
        %v670 = vld [vmem:[%s488] sm:$0xff]
        %v671 = vld [vmem:[%s488 + $0x8] sm:$0xff]
        %v672 = vld [vmem:[%s488 + $0x18] sm:$0xff]
        %v673 = vld [vmem:[%s488 + $0x20] sm:$0xff]
        %v674 = vld [vmem:[%s488 + $0x30] sm:$0xff]
        %v675 = vld [vmem:[%s488 + $0x38] sm:$0xff]
        %v676 = vld [vmem:[%s488 + $0x48] sm:$0xff]
        %v677 = vld [vmem:[%s488 + $0x50] sm:$0xff]
        %v678 = vld [vmem:[%s488 + $0x60] sm:$0xff]
        %v679 = vld [vmem:[%s488 + $0x68] sm:$0xff]
        %v680 = vld [vmem:[%s488 + $0x78] sm:$0xff]
        %v681 = vld [vmem:[%s488 + $0x80] sm:$0xff]
        %v682 = vld [vmem:[%s488 + $0x90] sm:$0xff]
        %v683 = vld [vmem:[%s488 + $0x98] sm:$0xff]
        %v684 = vld [vmem:[%s488 + $0xa8] sm:$0xff]
        %v685 = vld [vmem:[%s488 + $0xb0] sm:$0xff]
        %v686 = vlaneseq
        %v687 = vshrl.u32 %v686, 7
        %v688 = vsub.s32 0, %v687
        %v689 = vrot.slane %v527, %v688
        %v690 = vmul.f32 %v670, %v689
        %v691 = vmul.f32 %v671, %v689
        %v692 = vmul.f32 %v672, %v689
        %v693 = vmul.f32 %v673, %v689
        %v694 = vmul.f32 %v674, %v689
        %v695 = vmul.f32 %v675, %v689
        %v696 = vmul.f32 %v676, %v689
        %v697 = vmul.f32 %v677, %v689
        %v698 = vmul.f32 %v678, %v689
        %v699 = vmul.f32 %v679, %v689
        %v700 = vmul.f32 %v680, %v689
        %v701 = vmul.f32 %v681, %v689
        %v702 = vmul.f32 %v682, %v689
        %v703 = vmul.f32 %v683, %v689
        %v704 = vmul.f32 %v684, %v689
        %v705 = vmul.f32 %v685, %v689
        %v706 = vadd.f32 %v654, %v690
        %v707 = vadd.f32 %v655, %v691
        %v708 = vadd.f32 %v656, %v692
        %v709 = vadd.f32 %v657, %v693
        %v710 = vadd.f32 %v658, %v694
        %v711 = vadd.f32 %v659, %v695
        %v712 = vadd.f32 %v660, %v696
        %v713 = vadd.f32 %v661, %v697
        %v714 = vadd.f32 %v662, %v698
        %v715 = vadd.f32 %v663, %v699
        %v716 = vadd.f32 %v664, %v700
        %v717 = vadd.f32 %v665, %v701
        %v718 = vadd.f32 %v666, %v702
        %v719 = vadd.f32 %v667, %v703
        %v720 = vadd.f32 %v668, %v704
        %v721 = vadd.f32 %v669, %v705
        %v722 = vld [vmem:[%s488 + $0x1] sm:$0xff]
        %v723 = vld [vmem:[%s488 + $0x9] sm:$0xff]
        %v724 = vld [vmem:[%s488 + $0x19] sm:$0xff]
        %v725 = vld [vmem:[%s488 + $0x21] sm:$0xff]
        %v726 = vld [vmem:[%s488 + $0x31] sm:$0xff]
        %v727 = vld [vmem:[%s488 + $0x39] sm:$0xff]
        %v728 = vld [vmem:[%s488 + $0x49] sm:$0xff]
        %v729 = vld [vmem:[%s488 + $0x51] sm:$0xff]
        %v730 = vld [vmem:[%s488 + $0x61] sm:$0xff]
        %v731 = vld [vmem:[%s488 + $0x69] sm:$0xff]
        %v732 = vld [vmem:[%s488 + $0x79] sm:$0xff]
        %v733 = vld [vmem:[%s488 + $0x81] sm:$0xff]
        %v734 = vld [vmem:[%s488 + $0x91] sm:$0xff]
        %v735 = vld [vmem:[%s488 + $0x99] sm:$0xff]
        %v736 = vld [vmem:[%s488 + $0xa9] sm:$0xff]
        %v737 = vld [vmem:[%s488 + $0xb1] sm:$0xff]
        %v738 = vlaneseq
        %v739 = vshrl.u32 %v738, 7
        %v740 = vsub.s32 1, %v739
        %v741 = vrot.slane %v527, %v740
        %v742 = vmul.f32 %v722, %v741
        %v743 = vmul.f32 %v723, %v741
        %v744 = vmul.f32 %v724, %v741
        %v745 = vmul.f32 %v725, %v741
        %v746 = vmul.f32 %v726, %v741
        %v747 = vmul.f32 %v727, %v741
        %v748 = vmul.f32 %v728, %v741
        %v749 = vmul.f32 %v729, %v741
        %v750 = vmul.f32 %v730, %v741
        %v751 = vmul.f32 %v731, %v741
        %v752 = vmul.f32 %v732, %v741
        %v753 = vmul.f32 %v733, %v741
        %v754 = vmul.f32 %v734, %v741
        %v755 = vmul.f32 %v735, %v741
        %v756 = vmul.f32 %v736, %v741
        %v757 = vmul.f32 %v737, %v741
        %v758 = vadd.f32 %v706, %v742
        %v759 = vadd.f32 %v707, %v743
        %v760 = vadd.f32 %v708, %v744
        %v761 = vadd.f32 %v709, %v745
        %v762 = vadd.f32 %v710, %v746
        %v763 = vadd.f32 %v711, %v747
        %v764 = vadd.f32 %v712, %v748
        %v765 = vadd.f32 %v713, %v749
        %v766 = vadd.f32 %v714, %v750
        %v767 = vadd.f32 %v715, %v751
        %v768 = vadd.f32 %v716, %v752
        %v769 = vadd.f32 %v717, %v753
        %v770 = vadd.f32 %v718, %v754
        %v771 = vadd.f32 %v719, %v755
        %v772 = vadd.f32 %v720, %v756
        %v773 = vadd.f32 %v721, %v757
        %v774 = vld [vmem:[%s488 + $0x2] sm:$0xff]
        %v775 = vld [vmem:[%s488 + $0xa] sm:$0xff]
        %v776 = vld [vmem:[%s488 + $0x1a] sm:$0xff]
        %v777 = vld [vmem:[%s488 + $0x22] sm:$0xff]
        %v778 = vld [vmem:[%s488 + $0x32] sm:$0xff]
        %v779 = vld [vmem:[%s488 + $0x3a] sm:$0xff]
        %v780 = vld [vmem:[%s488 + $0x4a] sm:$0xff]
        %v781 = vld [vmem:[%s488 + $0x52] sm:$0xff]
        %v782 = vld [vmem:[%s488 + $0x62] sm:$0xff]
        %v783 = vld [vmem:[%s488 + $0x6a] sm:$0xff]
        %v784 = vld [vmem:[%s488 + $0x7a] sm:$0xff]
        %v785 = vld [vmem:[%s488 + $0x82] sm:$0xff]
        %v786 = vld [vmem:[%s488 + $0x92] sm:$0xff]
        %v787 = vld [vmem:[%s488 + $0x9a] sm:$0xff]
        %v788 = vld [vmem:[%s488 + $0xaa] sm:$0xff]
        %v789 = vld [vmem:[%s488 + $0xb2] sm:$0xff]
        %v790 = vlaneseq
        %v791 = vshrl.u32 %v790, 7
        %v792 = vsub.s32 2, %v791
        %v793 = vrot.slane %v527, %v792
        %v794 = vmul.f32 %v774, %v793
        %v795 = vmul.f32 %v775, %v793
        %v796 = vmul.f32 %v776, %v793
        %v797 = vmul.f32 %v777, %v793
        %v798 = vmul.f32 %v778, %v793
        %v799 = vmul.f32 %v779, %v793
        %v800 = vmul.f32 %v780, %v793
        %v801 = vmul.f32 %v781, %v793
        %v802 = vmul.f32 %v782, %v793
        %v803 = vmul.f32 %v783, %v793
        %v804 = vmul.f32 %v784, %v793
        %v805 = vmul.f32 %v785, %v793
        %v806 = vmul.f32 %v786, %v793
        %v807 = vmul.f32 %v787, %v793
        %v808 = vmul.f32 %v788, %v793
        %v809 = vmul.f32 %v789, %v793
        %v810 = vadd.f32 %v758, %v794
        %v811 = vadd.f32 %v759, %v795
        %v812 = vadd.f32 %v760, %v796
        %v813 = vadd.f32 %v761, %v797
        %v814 = vadd.f32 %v762, %v798
        %v815 = vadd.f32 %v763, %v799
        %v816 = vadd.f32 %v764, %v800
        %v817 = vadd.f32 %v765, %v801
        %v818 = vadd.f32 %v766, %v802
        %v819 = vadd.f32 %v767, %v803
        %v820 = vadd.f32 %v768, %v804
        %v821 = vadd.f32 %v769, %v805
        %v822 = vadd.f32 %v770, %v806
        %v823 = vadd.f32 %v771, %v807
        %v824 = vadd.f32 %v772, %v808
        %v825 = vadd.f32 %v773, %v809
        %s826 = scalar_lea.vmem [#allocation2], 48
        %v827 = vld [vmem:[%s826] sm:$0xff]
        %v828 = vld [vmem:[%s826 + $0x8] sm:$0xff]
        %v829 = vld [vmem:[%s826 + $0x18] sm:$0xff]
        %v830 = vld [vmem:[%s826 + $0x20] sm:$0xff]
        %v831 = vld [vmem:[%s826 + $0x30] sm:$0xff]
        %v832 = vld [vmem:[%s826 + $0x38] sm:$0xff]
        %v833 = vld [vmem:[%s826 + $0x48] sm:$0xff]
        %v834 = vld [vmem:[%s826 + $0x50] sm:$0xff]
        %v835 = vld [vmem:[%s826 + $0x60] sm:$0xff]
        %v836 = vld [vmem:[%s826 + $0x68] sm:$0xff]
        %v837 = vld [vmem:[%s826 + $0x78] sm:$0xff]
        %v838 = vld [vmem:[%s826 + $0x80] sm:$0xff]
        %v839 = vld [vmem:[%s826 + $0x90] sm:$0xff]
        %v840 = vld [vmem:[%s826 + $0x98] sm:$0xff]
        %v841 = vld [vmem:[%s826 + $0xa8] sm:$0xff]
        %v842 = vld [vmem:[%s826 + $0xb0] sm:$0xff]
        %v843 = vlaneseq
        %v844 = vshrl.u32 %v843, 7
        %v845 = vsub.s32 0, %v844
        %v846 = vrot.slane %v528, %v845
        %v847 = vmul.f32 %v827, %v846
        %v848 = vmul.f32 %v828, %v846
        %v849 = vmul.f32 %v829, %v846
        %v850 = vmul.f32 %v830, %v846
        %v851 = vmul.f32 %v831, %v846
        %v852 = vmul.f32 %v832, %v846
        %v853 = vmul.f32 %v833, %v846
        %v854 = vmul.f32 %v834, %v846
        %v855 = vmul.f32 %v835, %v846
        %v856 = vmul.f32 %v836, %v846
        %v857 = vmul.f32 %v837, %v846
        %v858 = vmul.f32 %v838, %v846
        %v859 = vmul.f32 %v839, %v846
        %v860 = vmul.f32 %v840, %v846
        %v861 = vmul.f32 %v841, %v846
        %v862 = vmul.f32 %v842, %v846
        %v863 = vadd.f32 %v810, %v847
        %v864 = vadd.f32 %v811, %v848
        %v865 = vadd.f32 %v812, %v849
        %v866 = vadd.f32 %v813, %v850
        %v867 = vadd.f32 %v814, %v851
        %v868 = vadd.f32 %v815, %v852
        %v869 = vadd.f32 %v816, %v853
        %v870 = vadd.f32 %v817, %v854
        %v871 = vadd.f32 %v818, %v855
        %v872 = vadd.f32 %v819, %v856
        %v873 = vadd.f32 %v820, %v857
        %v874 = vadd.f32 %v821, %v858
        %v875 = vadd.f32 %v822, %v859
        %v876 = vadd.f32 %v823, %v860
        %v877 = vadd.f32 %v824, %v861
        %v878 = vadd.f32 %v825, %v862
        %v879 = vld [vmem:[%s826 + $0x1] sm:$0xff]
        %v880 = vld [vmem:[%s826 + $0x9] sm:$0xff]
        %v881 = vld [vmem:[%s826 + $0x19] sm:$0xff]
        %v882 = vld [vmem:[%s826 + $0x21] sm:$0xff]
        %v883 = vld [vmem:[%s826 + $0x31] sm:$0xff]
        %v884 = vld [vmem:[%s826 + $0x39] sm:$0xff]
        %v885 = vld [vmem:[%s826 + $0x49] sm:$0xff]
        %v886 = vld [vmem:[%s826 + $0x51] sm:$0xff]
        %v887 = vld [vmem:[%s826 + $0x61] sm:$0xff]
        %v888 = vld [vmem:[%s826 + $0x69] sm:$0xff]
        %v889 = vld [vmem:[%s826 + $0x79] sm:$0xff]
        %v890 = vld [vmem:[%s826 + $0x81] sm:$0xff]
        %v891 = vld [vmem:[%s826 + $0x91] sm:$0xff]
        %v892 = vld [vmem:[%s826 + $0x99] sm:$0xff]
        %v893 = vld [vmem:[%s826 + $0xa9] sm:$0xff]
        %v894 = vld [vmem:[%s826 + $0xb1] sm:$0xff]
        %v895 = vlaneseq
        %v896 = vshrl.u32 %v895, 7
        %v897 = vsub.s32 1, %v896
        %v898 = vrot.slane %v528, %v897
        %v899 = vmul.f32 %v879, %v898
        %v900 = vmul.f32 %v880, %v898
        %v901 = vmul.f32 %v881, %v898
        %v902 = vmul.f32 %v882, %v898
        %v903 = vmul.f32 %v883, %v898
        %v904 = vmul.f32 %v884, %v898
        %v905 = vmul.f32 %v885, %v898
        %v906 = vmul.f32 %v886, %v898
        %v907 = vmul.f32 %v887, %v898
        %v908 = vmul.f32 %v888, %v898
        %v909 = vmul.f32 %v889, %v898
        %v910 = vmul.f32 %v890, %v898
        %v911 = vmul.f32 %v891, %v898
        %v912 = vmul.f32 %v892, %v898
        %v913 = vmul.f32 %v893, %v898
        %v914 = vmul.f32 %v894, %v898
        %v915 = vadd.f32 %v863, %v899
        %v916 = vadd.f32 %v864, %v900
        %v917 = vadd.f32 %v865, %v901
        %v918 = vadd.f32 %v866, %v902
        %v919 = vadd.f32 %v867, %v903
        %v920 = vadd.f32 %v868, %v904
        %v921 = vadd.f32 %v869, %v905
        %v922 = vadd.f32 %v870, %v906
        %v923 = vadd.f32 %v871, %v907
        %v924 = vadd.f32 %v872, %v908
        %v925 = vadd.f32 %v873, %v909
        %v926 = vadd.f32 %v874, %v910
        %v927 = vadd.f32 %v875, %v911
        %v928 = vadd.f32 %v876, %v912
        %v929 = vadd.f32 %v877, %v913
        %v930 = vadd.f32 %v878, %v914
        %v931 = vld [vmem:[%s826 + $0x2] sm:$0xff]
        %v932 = vld [vmem:[%s826 + $0xa] sm:$0xff]
        %v933 = vld [vmem:[%s826 + $0x1a] sm:$0xff]
        %v934 = vld [vmem:[%s826 + $0x22] sm:$0xff]
        %v935 = vld [vmem:[%s826 + $0x32] sm:$0xff]
        %v936 = vld [vmem:[%s826 + $0x3a] sm:$0xff]
        %v937 = vld [vmem:[%s826 + $0x4a] sm:$0xff]
        %v938 = vld [vmem:[%s826 + $0x52] sm:$0xff]
        %v939 = vld [vmem:[%s826 + $0x62] sm:$0xff]
        %v940 = vld [vmem:[%s826 + $0x6a] sm:$0xff]
        %v941 = vld [vmem:[%s826 + $0x7a] sm:$0xff]
        %v942 = vld [vmem:[%s826 + $0x82] sm:$0xff]
        %v943 = vld [vmem:[%s826 + $0x92] sm:$0xff]
        %v944 = vld [vmem:[%s826 + $0x9a] sm:$0xff]
        %v945 = vld [vmem:[%s826 + $0xaa] sm:$0xff]
        %v946 = vld [vmem:[%s826 + $0xb2] sm:$0xff]
        %v947 = vlaneseq
        %v948 = vshrl.u32 %v947, 7
        %v949 = vsub.s32 2, %v948
        %v950 = vrot.slane %v528, %v949
        %v951 = vmul.f32 %v931, %v950
        %v952 = vmul.f32 %v932, %v950
        %v953 = vmul.f32 %v933, %v950
        %v954 = vmul.f32 %v934, %v950
        %v955 = vmul.f32 %v935, %v950
        %v956 = vmul.f32 %v936, %v950
        %v957 = vmul.f32 %v937, %v950
        %v958 = vmul.f32 %v938, %v950
        %v959 = vmul.f32 %v939, %v950
        %v960 = vmul.f32 %v940, %v950
        %v961 = vmul.f32 %v941, %v950
        %v962 = vmul.f32 %v942, %v950
        %v963 = vmul.f32 %v943, %v950
        %v964 = vmul.f32 %v944, %v950
        %v965 = vmul.f32 %v945, %v950
        %v966 = vmul.f32 %v946, %v950
        %v967 = vadd.f32 %v915, %v951
        %v968 = vadd.f32 %v916, %v952
        %v969 = vadd.f32 %v917, %v953
        %v970 = vadd.f32 %v918, %v954
        %v971 = vadd.f32 %v919, %v955
        %v972 = vadd.f32 %v920, %v956
        %v973 = vadd.f32 %v921, %v957
        %v974 = vadd.f32 %v922, %v958
        %v975 = vadd.f32 %v923, %v959
        %v976 = vadd.f32 %v924, %v960
        %v977 = vadd.f32 %v925, %v961
        %v978 = vadd.f32 %v926, %v962
        %v979 = vadd.f32 %v927, %v963
        %v980 = vadd.f32 %v928, %v964
        %v981 = vadd.f32 %v929, %v965
        %v982 = vadd.f32 %v930, %v966
        %v984 = vlaneseq
        %v985 = vshrl.u32 %v984, 7
        %v986 = vsub.s32 0, %v985
        %v987 = vrot.slane %v529, %v986
        %v989 = vadd.f32 %v967, %v987
        %v990 = vadd.f32 %v968, %v987
        %v991 = vadd.f32 %v969, %v987
        %v992 = vadd.f32 %v970, %v987
        %v993 = vadd.f32 %v971, %v987
        %v994 = vadd.f32 %v972, %v987
        %v995 = vadd.f32 %v973, %v987
        %v996 = vadd.f32 %v974, %v987
        %v997 = vadd.f32 %v975, %v987
        %v998 = vadd.f32 %v976, %v987
        %v999 = vadd.f32 %v977, %v987
        %v1000 = vadd.f32 %v978, %v987
        %v1001 = vadd.f32 %v979, %v987
        %v1002 = vadd.f32 %v980, %v987
        %v1003 = vadd.f32 %v981, %v987
        %v1004 = vadd.f32 %v982, %v987
        %1005 = vst [vmem:[%s438] sm:$0xff] %v989
        %1006 = vst [vmem:[%s438 + $0x8] sm:$0xff] %v990
        %1007 = vst [vmem:[%s438 + $0x10] sm:$0xff] %v991
        %1008 = vst [vmem:[%s438 + $0x18] sm:$0xff] %v992
        %1009 = vst [vmem:[%s438 + $0x20] sm:$0xff] %v993
        %1010 = vst [vmem:[%s438 + $0x28] sm:$0xff] %v994
        %1011 = vst [vmem:[%s438 + $0x30] sm:$0xff] %v995
        %1012 = vst [vmem:[%s438 + $0x38] sm:$0xff] %v996
        %1013 = vst [vmem:[%s438 + $0x40] sm:$0xff] %v997
        %1014 = vst [vmem:[%s438 + $0x48] sm:$0xff] %v998
        %1015 = vst [vmem:[%s438 + $0x50] sm:$0xff] %v999
        %1016 = vst [vmem:[%s438 + $0x58] sm:$0xff] %v1000
        %1017 = vst [vmem:[%s438 + $0x60] sm:$0xff] %v1001
        %1018 = vst [vmem:[%s438 + $0x68] sm:$0xff] %v1002
        %1019 = vst [vmem:[%s438 + $0x70] sm:$0xff] %v1003
        %1020 = vst [vmem:[%s438 + $0x78] sm:$0xff] %v1004
        %s1021 = sand.u32 %s217, 1
        %s1022 = scalar_lea.sflag [#allocation5], %s1021
        %s1023 = sand.u32 %s217, 1
        %s1024 = smul.addr %s1023, 128
        %s1025 = scalar_lea.vmem [#allocation11], %s1024
        // Predicated region
        $region57: #{tpu_custom_call.1} parent=39 // pred_check
          %p1026 = pneg %p227
        $region58: #{tpu_custom_call.1} parent=39 // pred_check_branch
          %1028 = sbr.rel (%p1026) target = $region60
        $region59: #{tpu_custom_call.1} parent=39 // pred_region
          %s1029 = smul.u32 8, %s35
          %s1031 = ssub.s32 2048, 2048
          %1032 = vsyncadd %s1022, %s1031
          %s1033 = smul.addr %s1029, 4
          %s1034 = sadd.s32 %s34, %s1033
          %s1035 = smul.addr %s33, 64
          %s1036 = sadd.s32 %s1034, %s1035
          %s1037 = smul.addr %s1036, 128
          %s1038 = scalar_lea.hbm %s5, %s1037
          %s1039 = sshll.u32 %s1025, 4
          %s1040 = int_to_ptr.vmem [resolvable:$true] %s1039
          %1045 = dma.vmem_to_hbm [thread:$0]  %s1040, 2048, %s1038, %s1022, 128, 256, 8
        $region60: #{tpu_custom_call.1} parent=39 // pred_fallthru
          _
      $region40: #{tpu_custom_call.1} parent=5 // pred_fallthru
        _
      %p1046 = scmp.le.s32.totalorder 2, %s23
      // Predicated region
      $region61: #{tpu_custom_call.1} parent=5 // pred_check
        %p1047 = pneg %p1046
      $region62: #{tpu_custom_call.1} parent=5 // pred_check_branch
        %1049 = sbr.rel (%p1047) target = $region64
      $region63: #{tpu_custom_call.1} parent=5 // pred_region
        %s1050 = ssub.s32 %s23, 2
        // Predicated region
        $region65: #{tpu_custom_call.1} parent=63 // pred_check
          %p1051 = pneg %p233
        $region66: #{tpu_custom_call.1} parent=63 // pred_check_branch
          %1053 = sbr.rel (%p1051) target = $region68
        $region67: #{tpu_custom_call.1} parent=63 // pred_region
          %s1054 = sand.u32 %s218, 1
          %s1055 = scalar_lea.sflag [#allocation5], %s1054
          %s1056 = sand.u32 %s218, 1
          %s1057 = smul.addr %s1056, 128
          %s1058 = scalar_lea.vmem [#allocation11], %s1057
          %1059 = dma.done %s1055, 2048
        $region68: #{tpu_custom_call.1} parent=63 // pred_fallthru
          _
      $region64: #{tpu_custom_call.1} parent=5 // pred_fallthru
        _
    $region6: #{tpu_custom_call.1} parent=1 // loop_footer
      %s27 = sadd.s32 1, %s23
    $region7: #{tpu_custom_call.1} parent=1 // loop_footer_branch
      %22 = sbr.rel target = $region3
    $region8: #{tpu_custom_call.1} parent=1 // loop_exit
      _
    %1060 = vsyncpa [#allocation4], 1
    %s1061 = scalar_lea.sflag [#allocation4], 1
    %1062 = vsyncpa %s1061, 1
    %1063 = vsyncpa [#allocation7], 1
    %s1064 = scalar_lea.sflag [#allocation7], 1
    %1065 = vsyncpa %s1064, 1
    %1066 = vsyncpa [#allocation10], 1
    %s1067 = scalar_lea.sflag [#allocation10], 1
    %1068 = vsyncpa %s1067, 1
    %1069 = vsyncpa [#allocation5], 1
    %s1070 = scalar_lea.sflag [#allocation5], 1
    %1071 = vsyncpa %s1070, 1

</llo_original>
